<compile_context>
chip_gen: v7x
topology: tpu7x:2x2x1
jax: 0.10.0
libtpu: 0.0.40
codegen_flags: <defaults>
</compile_context>

<pallas_src>
import functools

import jax
import jax.numpy as jnp
from jax.experimental import pallas as pl
from jax.experimental.pallas import tpu as pltpu


def _round_up(x, m):
    return (x + m - 1) // m * m


# Below this hidden size the extra double-buffered copy of the resident weight
# is negligible; above it, single-buffer it to reclaim VMEM for bigger tiles.
_SINGLE_BUFFER_WEIGHT_MIN_HP = 1024


# --------------------------------------------------------------------------
# Kernel: one SAGEConv layer, tiled over (output-row tiles i, source tiles k).
# --------------------------------------------------------------------------
def sage_layer_kernel(a_ref,        # (tm, tk)   int8  unnormalized adjacency counts
                      xs_ref,       # (tk, Hp)   bf16  source-node features
                      invdeg_ref,   # (tm, 1)    f32   1/max(deg,1)
                      self_ref,     # (tm, Hp)   f32   precomputed X @ W_r^T + b
                      wl_ref,       # (Hp, Hp)   bf16  W_l^T (resident)
                      o_ref,        # (tm, Hp)   out
                      acc_ref,      # (tm, Hp)   f32   scratch accumulator
                      *, apply_relu):
    k = pl.program_id(1)

    @pl.when(k == 0)
    def _():
        acc_ref[...] = jnp.zeros_like(acc_ref)

    # Upcast the int8 counts to bf16 in VMEM (cheap VPU, hidden under MXU/DMA)
    # and accumulate Sum_{j in source tile} A[i, j] * x_j in f32.
    a_bf16 = a_ref[...].astype(jnp.float32).astype(jnp.bfloat16)
    acc_ref[...] += jnp.dot(a_bf16, xs_ref[...],
                            preferred_element_type=jnp.float32)

    @pl.when(k == pl.num_programs(1) - 1)
    def _():
        # mean aggregation = exact f32 rescale of the integer count matmul.
        agg = (acc_ref[...] * invdeg_ref[...]).astype(jnp.bfloat16)
        out = (jnp.dot(agg, wl_ref[...], preferred_element_type=jnp.float32)
               + self_ref[...])
        if apply_relu:
            out = jnp.maximum(out, 0.0)
        o_ref[...] = out.astype(o_ref.dtype)


# --------------------------------------------------------------------------
# VMEM budgeting and per-generation tile selection.
# --------------------------------------------------------------------------
def _vmem_capacity_bytes():
    try:
        cap = int(pltpu.get_tpu_info().vmem_capacity_bytes)
        if cap > 0:
            return cap
    except Exception:
        pass
    return 64 * 1024 * 1024     # v7x per-TC VMEM — the binding constraint


def _vmem_footprint(tm, tk, h_pad, out_bytes):
    """Exact-ish pipelined footprint of one sage_layer call."""
    w_bufs = 1 if h_pad >= _SINGLE_BUFFER_WEIGHT_MIN_HP else 2
    return (2 * tm * tk * 1                  # A tile (int8), double-buffered
            + 2 * tk * h_pad * 2             # source features (bf16), dbl-buffered
            + 2 * tm * 128 * 4               # 1/deg (lane-padded f32), dbl-buffered
            + 2 * tm * h_pad * 4             # self/bias term (f32), dbl-buffered
            + w_bufs * h_pad * h_pad * 2     # resident W_l (bf16)
            + 2 * tm * h_pad * out_bytes     # output, double-buffered
            + tm * h_pad * 4)                # f32 accumulator scratch


def _choose_tiles(n128, h_pad, out_bytes, budget):
    """Pick (tm, tk, n_pad): largest tiles fitting VMEM, cheapest by a simple
    cost model (HBM A/X bytes at ~1 B/ns + ~350 ns per grid step)."""
    best = None
    for tm in (1024, 512, 256, 128):
        if tm > n128:
            continue
        for tk in (2048, 1024, 512, 256, 128):
            if tk > n128:
                continue
            if _vmem_footprint(tm, tk, h_pad, out_bytes) > budget:
                continue
            n_pad = _round_up(n128, max(tm, tk))
            # Keep >= 2 row tiles when the graph allows it so the "parallel"
            # axis can shard across v7x's two TensorCores.
            if n128 >= 256 and n_pad // tm < 2:
                continue
            steps = (n_pad // tm) * (n_pad // tk)
            a_bytes = n_pad * n_pad                          # int8 A stream
            x_bytes = (n_pad // tm) * n_pad * h_pad * 2      # re-streamed xs
            cost = (a_bytes + x_bytes) / 1000.0 + steps * 350.0
            if best is None or cost < best[0]:
                best = (cost, tm, tk, n_pad)
    if best is None:
        return 128, 128, _round_up(n128, 128)
    return best[1], best[2], best[3]


def _weight_spec(h_pad):
    """Resident W_l BlockSpec; single-buffered when the copy is big enough to matter."""
    if h_pad >= _SINGLE_BUFFER_WEIGHT_MIN_HP and hasattr(pl, "Buffered"):
        try:
            return pl.BlockSpec((h_pad, h_pad), lambda i, k: (0, 0),
                                pipeline_mode=pl.Buffered(1))
        except Exception:
            pass
    return pl.BlockSpec((h_pad, h_pad), lambda i, k: (0, 0))


# --------------------------------------------------------------------------
# One SAGEConv layer as a pallas_call.
# --------------------------------------------------------------------------
def sage_layer(a8, inv_deg, x_bf16, self_term, wl_bf16,
               *, apply_relu, out_dtype, tm, tk, vmem_limit):
    n_pad = a8.shape[0]
    h_pad = x_bf16.shape[1]
    grid = (n_pad // tm, n_pad // tk)      # (row tiles, source/reduction tiles)

    kernel = functools.partial(sage_layer_kernel, apply_relu=apply_relu)

    return pl.pallas_call(
        kernel,
        out_shape=jax.ShapeDtypeStruct((n_pad, h_pad), out_dtype),
        grid_spec=pltpu.PrefetchScalarGridSpec(
            num_scalar_prefetch=0,
            grid=grid,
            in_specs=[
                pl.BlockSpec((tm, tk),     lambda i, k: (i, k)),   # A counts (int8)
                pl.BlockSpec((tk, h_pad),  lambda i, k: (k, 0)),   # source feats
                pl.BlockSpec((tm, 1),      lambda i, k: (i, 0)),   # 1/deg
                pl.BlockSpec((tm, h_pad),  lambda i, k: (i, 0)),   # self/bias term
                _weight_spec(h_pad),                               # W_l^T resident
            ],
            out_specs=pl.BlockSpec((tm, h_pad), lambda i, k: (i, 0)),
            scratch_shapes=[pltpu.VMEM((tm, h_pad), jnp.float32)],
        ),
        compiler_params=pltpu.CompilerParams(
            dimension_semantics=("parallel", "arbitrary"),
            vmem_limit_bytes=vmem_limit,
        ),
    )(a8, x_bf16, inv_deg, self_term, wl_bf16)


# --------------------------------------------------------------------------
# Plain-JAX glue: adjacency construction, padding, two-layer forward.
# --------------------------------------------------------------------------
def build_adjacency(edge_index, num_nodes_pad):
    """int8 edge-count adjacency + f32 1/deg column (no dense f32 materialization).

    Exact for per-(dst, src) multiplicity <= 127 (counts are clipped beyond).
    Depends only on edge_index, so the result can be cached across forwards.
    """
    src, dst = edge_index[0], edge_index[1]
    counts = jnp.zeros((num_nodes_pad, num_nodes_pad), jnp.int32).at[dst, src].add(1)
    a8 = jnp.clip(counts, 0, 127).astype(jnp.int8)
    deg = jnp.zeros((num_nodes_pad,), jnp.float32).at[dst].add(1.0)[:, None]
    inv_deg = 1.0 / jnp.maximum(deg, 1.0)
    return a8, inv_deg


def _pad_weight(w, h_pad):
    h_in, h_out = w.shape
    return (jnp.zeros((h_pad, h_pad), jnp.float32)
            .at[:h_in, :h_out].set(w).astype(jnp.bfloat16))


def _pad_bias(b, h_pad):
    return jnp.zeros((1, h_pad), jnp.float32).at[:, :b.shape[1]].set(b)


def gnn_forward(x, edge_index, params):
    n, h = x.shape
    h_pad = _round_up(h, 128)          # lane-dense feature dim
    n128 = _round_up(n, 128)

    capacity = _vmem_capacity_bytes()
    tm, tk, n_pad = _choose_tiles(n128, h_pad, out_bytes=4,
                                  budget=capacity * 3 // 4)
    footprint = _vmem_footprint(tm, tk, h_pad, 4)
    vmem_limit = int(min(capacity * 9 // 10, max(2 * footprint, 32 << 20)))

    # Graph preprocessing (cacheable: depends only on edge_index / n_pad).
    a8, inv_deg = build_adjacency(edge_index, n_pad)

    x_pad = (jnp.zeros((n_pad, h_pad), jnp.bfloat16)
             .at[:n, :h].set(x.astype(jnp.bfloat16)))

    w1l = _pad_weight(params["w1l_t"], h_pad)
    w1r = _pad_weight(params["w1r_t"], h_pad)
    b1 = _pad_bias(params["b1"], h_pad)
    w2l = _pad_weight(params["w2l_t"], h_pad)
    w2r = _pad_weight(params["w2r_t"], h_pad)
    b2 = _pad_bias(params["b2"], h_pad)

    # Self/bias terms hoisted out of the kernel as single XLA matmuls.
    self1 = jnp.dot(x_pad, w1r, preferred_element_type=jnp.float32) + b1
    h1 = sage_layer(a8, inv_deg, x_pad, self1, w1l,
                    apply_relu=True, out_dtype=jnp.bfloat16,
                    tm=tm, tk=tk, vmem_limit=vmem_limit)

    self2 = jnp.dot(h1, w2r, preferred_element_type=jnp.float32) + b2
    out = sage_layer(a8, inv_deg, h1, self2, w2l,
                     apply_relu=False, out_dtype=jnp.float32,
                     tm=tm, tk=tk, vmem_limit=vmem_limit)

    return out[:n, :h]


def init_params(key, hidden):
    ks = jax.random.split(key, 6)
    scale = 1.0 / jnp.sqrt(hidden)
    # Stored pre-transposed: w*_t has shape (in=H, out=H) so x @ w_t == x @ W^T.
    return {
        "w1l_t": jax.random.normal(ks[0], (hidden, hidden), jnp.float32) * scale,
        "w1r_t": jax.random.normal(ks[1], (hidden, hidden), jnp.float32) * scale,
        "b1":    jax.random.normal(ks[2], (1, hidden), jnp.float32) * scale,
        "w2l_t": jax.random.normal(ks[3], (hidden, hidden), jnp.float32) * scale,
        "w2r_t": jax.random.normal(ks[4], (hidden, hidden), jnp.float32) * scale,
        "b2":    jax.random.normal(ks[5], (1, hidden), jnp.float32) * scale,
    }


# --------------------------------------------------------------------------
# Pure-JAX references for correctness checks.
# --------------------------------------------------------------------------
def gnn_reference_matched(x, edge_index, params):
    """Same math as the kernel, in pure JAX with matching bf16/f32 precision."""
    n = x.shape[0]
    a8, inv_deg = build_adjacency(edge_index, n)
    a_bf = a8.astype(jnp.float32).astype(jnp.bfloat16)
    bf16, f32 = jnp.bfloat16, jnp.float32

    def sage(xb, wl, wr, b, relu):
        agg = (jnp.dot(a_bf, xb, preferred_element_type=f32) * inv_deg).astype(bf16)
        out = (jnp.dot(agg, wl.astype(bf16), preferred_element_type=f32)
               + jnp.dot(xb, wr.astype(bf16), preferred_element_type=f32)
               + b)
        return jnp.maximum(out, 0.0) if relu else out

    xb = x.astype(bf16)
    h1 = sage(xb, params["w1l_t"], params["w1r_t"], params["b1"], True).astype(bf16)
    return sage(h1, params["w2l_t"], params["w2r_t"], params["b2"], False)


def gnn_reference_f32(x, edge_index, params):
    """Full-f32 reference of the original module semantics."""
    n = x.shape[0]
    src, dst = edge_index[0], edge_index[1]
    a = jnp.zeros((n, n), jnp.float32).at[dst, src].add(1.0)
    a = a / jnp.maximum(jnp.sum(a, axis=1, keepdims=True), 1.0)
    h1 = jax.nn.relu(a @ x @ params["w1l_t"] + params["b1"] + x @ params["w1r_t"])
    return a @ h1 @ params["w2l_t"] + params["b2"] + h1 @ params["w2r_t"]


if __name__ == "__main__":
    key = jax.random.PRNGKey(0)
    k_x, k_e, k_p = jax.random.split(key, 3)

    num_nodes, hidden, num_edges = 16, 32, 48
    x = jax.random.normal(k_x, (num_nodes, hidden), jnp.float32)
    edge_index = jax.random.randint(k_e, (2, num_edges), 0, num_nodes, jnp.int32)
    params = init_params(k_p, hidden)

    out = jax.block_until_ready(gnn_forward(x, edge_index, params))
    assert out.shape == (num_nodes, hidden)
    assert out.dtype == jnp.float32

    # Tight check against a precision-matched pure-JAX implementation.
    ref_matched = gnn_reference_matched(x, edge_index, params)
    assert jnp.allclose(out, ref_matched, atol=1e-2, rtol=1e-2), (
        float(jnp.max(jnp.abs(out - ref_matched))))

    # Looser sanity check against the full-f32 original semantics.
    ref_f32 = gnn_reference_f32(x, edge_index, params)
    assert jnp.allclose(out, ref_f32, atol=2e-1, rtol=1e-1), (
        float(jnp.max(jnp.abs(out - ref_f32))))

    print("KERNEL_OK")
</pallas_src>

<mosaic_0001>
module attributes {stable_mosaic.version = 11 : i64} {
  func.func @sage_layer_kernel(%arg0: i32, %arg1: i32, %arg2: memref<128x128xi8, #tpu.memory_space<vmem>>, %arg3: memref<128x128xbf16, #tpu.memory_space<vmem>>, %arg4: memref<128x1xf32, #tpu.memory_space<vmem>>, %arg5: memref<128x128xf32, #tpu.memory_space<vmem>>, %arg6: memref<128x128xbf16, #tpu.memory_space<vmem>>, %arg7: memref<128x128xbf16, #tpu.memory_space<vmem>>, %arg8: memref<128x128xf32, #tpu.memory_space<vmem>>) attributes {dimension_semantics = [#tpu.dimension_semantics<parallel>, #tpu.dimension_semantics<arbitrary>], iteration_bounds = array<i64: 1, 1>, scalar_prefetch = 0 : i64, scratch_operands = 1 : i64, tpu.core_type = #tpu.core_type<tc>, window_params = [{transform_indices = @transform_0, window_bounds = array<i64: 128, 128>}, {transform_indices = @transform_1, window_bounds = array<i64: 128, 128>}, {transform_indices = @transform_2, window_bounds = array<i64: 128, 1>}, {transform_indices = @transform_3, window_bounds = array<i64: 128, 128>}, {pipeline_mode = #tpu.pipeline_mode<synchronous>, transform_indices = @transform_4, window_bounds = array<i64: 128, 128>}, {transform_indices = @transform_5, window_bounds = array<i64: 128, 128>}]} {
    %c0_i32 = arith.constant 0 : i32
    %0 = arith.cmpi eq, %arg1, %c0_i32 : i32
    %1 = arith.extui %0 : i1 to i32
    %c0_i32_0 = arith.constant 0 : i32
    %2 = arith.cmpi ne, %1, %c0_i32_0 : i32
    scf.if %2 {
      %cst_10 = arith.constant 0.000000e+00 : f32
      %14 = vector.broadcast %cst_10 : f32 to vector<128x128xf32>
      %c0_11 = arith.constant 0 : index
      %c0_12 = arith.constant 0 : index
      %15 = vector.load %arg8[%c0_11, %c0_12] : memref<128x128xf32, #tpu.memory_space<vmem>>, vector<128x128xf32>
      tpu.vector_store %arg8[%c0_11, %c0_12], %14 {strides = array<i32>} : memref<128x128xf32, #tpu.memory_space<vmem>>, vector<128x128xf32>,
    } else {
    }
    %c0 = arith.constant 0 : index
    %c0_1 = arith.constant 0 : index
    %3 = vector.load %arg2[%c0, %c0_1] : memref<128x128xi8, #tpu.memory_space<vmem>>, vector<128x128xi8>
    %4 = arith.sitofp %3 : vector<128x128xi8> to vector<128x128xf32>
    %5 = arith.truncf %4 : vector<128x128xf32> to vector<128x128xbf16>
    %c0_2 = arith.constant 0 : index
    %c0_3 = arith.constant 0 : index
    %6 = vector.load %arg8[%c0_2, %c0_3] : memref<128x128xf32, #tpu.memory_space<vmem>>, vector<128x128xf32>
    %c0_4 = arith.constant 0 : index
    %c0_5 = arith.constant 0 : index
    %7 = vector.load %arg3[%c0_4, %c0_5] : memref<128x128xbf16, #tpu.memory_space<vmem>>, vector<128x128xbf16>
    %cst = arith.constant dense<0.000000e+00> : vector<128x128xf32>
    %8 = tpu.matmul %5, %7, %cst {dimension_numbers = #tpu.dot_dimension_numbers<[1], [0], [0], [1], [0, 0, 1, 1], [], []>} : vector<128x128xbf16>, vector<128x128xbf16>, vector<128x128xf32> -> vector<128x128xf32>
    %9 = arith.addf %6, %8 : vector<128x128xf32>
    %c0_6 = arith.constant 0 : index
    %c0_7 = arith.constant 0 : index
    %10 = vector.load %arg8[%c0_6, %c0_7] : memref<128x128xf32, #tpu.memory_space<vmem>>, vector<128x128xf32>
    tpu.vector_store %arg8[%c0_6, %c0_7], %9 {strides = array<i32>} : memref<128x128xf32, #tpu.memory_space<vmem>>, vector<128x128xf32>,
    %c0_i32_8 = arith.constant 0 : i32
    %11 = arith.cmpi eq, %arg1, %c0_i32_8 : i32
    %12 = arith.extui %11 : i1 to i32
    %c0_i32_9 = arith.constant 0 : i32
    %13 = arith.cmpi ne, %12, %c0_i32_9 : i32
    scf.if %13 {
      %c0_10 = arith.constant 0 : index
      %c0_11 = arith.constant 0 : index
      %14 = vector.load %arg8[%c0_10, %c0_11] : memref<128x128xf32, #tpu.memory_space<vmem>>, vector<128x128xf32>
      %c0_12 = arith.constant 0 : index
      %c0_13 = arith.constant 0 : index
      %15 = vector.load %arg4[%c0_12, %c0_13] : memref<128x1xf32, #tpu.memory_space<vmem>>, vector<128x1xf32>
      %16 = vector.broadcast %15 : vector<128x1xf32> to vector<128x128xf32>
      %17 = arith.mulf %14, %16 : vector<128x128xf32>
      %18 = arith.truncf %17 : vector<128x128xf32> to vector<128x128xbf16>
      %c0_14 = arith.constant 0 : index
      %c0_15 = arith.constant 0 : index
      %19 = vector.load %arg6[%c0_14, %c0_15] : memref<128x128xbf16, #tpu.memory_space<vmem>>, vector<128x128xbf16>
      %cst_16 = arith.constant dense<0.000000e+00> : vector<128x128xf32>
      %20 = tpu.matmul %18, %19, %cst_16 {dimension_numbers = #tpu.dot_dimension_numbers<[1], [0], [0], [1], [0, 0, 1, 1], [], []>} : vector<128x128xbf16>, vector<128x128xbf16>, vector<128x128xf32> -> vector<128x128xf32>
      %c0_17 = arith.constant 0 : index
      %c0_18 = arith.constant 0 : index
      %21 = vector.load %arg5[%c0_17, %c0_18] : memref<128x128xf32, #tpu.memory_space<vmem>>, vector<128x128xf32>
      %22 = arith.addf %20, %21 : vector<128x128xf32>
      %cst_19 = arith.constant 0.000000e+00 : f32
      %23 = vector.broadcast %cst_19 : f32 to vector<128x128xf32>
      %24 = arith.maximumf %22, %23 : vector<128x128xf32>
      %25 = arith.truncf %24 : vector<128x128xf32> to vector<128x128xbf16>
      %c0_20 = arith.constant 0 : index
      %c0_21 = arith.constant 0 : index
      %26 = vector.load %arg7[%c0_20, %c0_21] : memref<128x128xbf16, #tpu.memory_space<vmem>>, vector<128x128xbf16>
      tpu.vector_store %arg7[%c0_20, %c0_21], %25 {strides = array<i32>} : memref<128x128xbf16, #tpu.memory_space<vmem>>, vector<128x128xbf16>,
    } else {
    }
    return
  }
  func.func @transform_0(%arg0: i32, %arg1: i32) -> (i32, i32) {
    %c0_i32 = arith.constant 0 : i32
    return %arg0, %arg1 : i32, i32
  }
  func.func @transform_1(%arg0: i32, %arg1: i32) -> (i32, i32) {
    %c0_i32 = arith.constant 0 : i32
    %c0_i32_0 = arith.constant 0 : i32
    return %arg1, %c0_i32 : i32, i32
  }
  func.func @transform_2(%arg0: i32, %arg1: i32) -> (i32, i32) {
    %c0_i32 = arith.constant 0 : i32
    %c0_i32_0 = arith.constant 0 : i32
    return %arg0, %c0_i32 : i32, i32
  }
  func.func @transform_3(%arg0: i32, %arg1: i32) -> (i32, i32) {
    %c0_i32 = arith.constant 0 : i32
    %c0_i32_0 = arith.constant 0 : i32
    return %arg0, %c0_i32 : i32, i32
  }
  func.func @transform_4(%arg0: i32, %arg1: i32) -> (i32, i32) {
    %c0_i32 = arith.constant 0 : i32
    %c0_i32_0 = arith.constant 0 : i32
    %c0_i32_1 = arith.constant 0 : i32
    return %c0_i32, %c0_i32_0 : i32, i32
  }
  func.func @transform_5(%arg0: i32, %arg1: i32) -> (i32, i32) {
    %c0_i32 = arith.constant 0 : i32
    %c0_i32_0 = arith.constant 0 : i32
    return %arg0, %c0_i32 : i32, i32
  }
}

</mosaic_0001>

<llo_original>
// kernel: tpu_custom_call.1
$region0: #{tpu_custom_call.1}
  #allocation0 [shape = 'u32[]', space=smem, size = 0x4, offset = 0x4, fixed_abs, tag = 'smem constant byte address 0x4 - core index']
  #allocation1 [shape = 'u32[144,128]{1,0:T(1,128)}', space=vmem, size = 0x12000, scoped, tag = 'internal scratch']
  #allocation2 [shape = 'f32[128,128]{1,0:T(8,128)}', space=vmem, size = 0x10000, scoped, tag = 'scratch operand']
  %s0 = inlined_call_operand.hbm [shape: s8[128,128], index: 0, kind: input, shape index: {}]
  %s1 = inlined_call_operand.hbm [shape: bf16[128,128], index: 1, kind: input, shape index: {}]
  %s2 = inlined_call_operand.vmem [shape: f32[128,1], index: 2, kind: input, shape index: {}]
  %s3 = inlined_call_operand.vmem [shape: f32[128,128], index: 3, kind: input, shape index: {}]
  %s4 = inlined_call_operand.hbm [shape: bf16[128,128], index: 4, kind: input, shape index: {}]
  %s5 = inlined_call_operand.hbm [shape: bf16[128,128], index: 5, kind: output, shape index: {}]
  %s6 = sld [smem:[#allocation0]]
  $region50: #{tpu_custom_call.1} parent=0
    _
  %s8 = ssub.s32 1, %s6
  %s9 = scalar_select 0, %s8, %s6
  $region1: #{tpu_custom_call.1} parent=0
    #allocation3 [shape = 'u8[16384]{0}', space=vmem, size = 0x4000, scoped, tag = 'input window, operand 0, single buffered']
    #allocation4 [shape = 's32[1]{0}', space=sflag, size = 0x4, scoped, tag = 'scoped memory for tpu_custom_call.1']
    #allocation5 [shape = 's32[1]{0}', space=sflag, size = 0x4, scoped, tag = 'scoped memory for tpu_custom_call.1']
    #allocation6 [shape = 'u8[32768]{0}', space=vmem, size = 0x8000, scoped, tag = 'input window, operand 1, single buffered']
    #allocation7 [shape = 's32[1]{0}', space=sflag, size = 0x4, scoped, tag = 'scoped memory for tpu_custom_call.1']
    #allocation8 [shape = 'u8[32768]{0}', space=vmem, size = 0x8000, scoped, tag = 'input window, operand 4, single buffered']
    #allocation9 [shape = 'u8[32768]{0}', space=vmem, size = 0x8000, scoped, tag = 'output window, operand 0, single buffered']
    %10 = vsyncpa [#allocation4], 0
    %11 = vsyncpa [#allocation7], 0
    %12 = vsyncpa [#allocation5], 0
    // Predicated region
    $region2: #{tpu_custom_call.1} parent=1 // pred_check
      _
    $region3: #{tpu_custom_call.1} parent=1 // pred_check_branch
      %14 = sbr.rel (0) target = $region5
    $region4: #{tpu_custom_call.1} parent=1 // pred_region
      %s16 = ssub.s32 512, 512
      %17 = vsyncadd [#allocation4], %s16
      %s18 = sshll.u32 [#allocation3], 4
      %s19 = int_to_ptr.vmem [resolvable:$true] %s18
      %24 = dma.hbm_to_vmem [thread:$0]  %s0, 512, %s19, [#allocation4], 128, 128, 8
    $region5: #{tpu_custom_call.1} parent=1 // pred_fallthru
      _
    // Predicated region
    $region6: #{tpu_custom_call.1} parent=1 // pred_check
      _
    $region7: #{tpu_custom_call.1} parent=1 // pred_check_branch
      %26 = sbr.rel (0) target = $region9
    $region8: #{tpu_custom_call.1} parent=1 // pred_region
      %s28 = ssub.s32 1024, 1024
      %29 = vsyncadd [#allocation7], %s28
      %s30 = sshll.u32 [#allocation6], 4
      %s31 = int_to_ptr.vmem [resolvable:$true] %s30
      %36 = dma.hbm_to_vmem [thread:$0]  %s1, 1024, %s31, [#allocation7], 64, 64, 4
    $region9: #{tpu_custom_call.1} parent=1 // pred_fallthru
      _
    // Predicated region
    $region10: #{tpu_custom_call.1} parent=1 // pred_check
      _
    $region11: #{tpu_custom_call.1} parent=1 // pred_check_branch
      %38 = sbr.rel (0) target = $region13
    $region12: #{tpu_custom_call.1} parent=1 // pred_region
      _
    $region13: #{tpu_custom_call.1} parent=1 // pred_fallthru
      _
    // Predicated region
    $region14: #{tpu_custom_call.1} parent=1 // pred_check
      _
    $region15: #{tpu_custom_call.1} parent=1 // pred_check_branch
      %40 = sbr.rel (0) target = $region17
    $region16: #{tpu_custom_call.1} parent=1 // pred_region
      _
    $region17: #{tpu_custom_call.1} parent=1 // pred_fallthru
      _
    // Predicated region
    $region18: #{tpu_custom_call.1} parent=1 // pred_check
      _
    $region19: #{tpu_custom_call.1} parent=1 // pred_check_branch
      %42 = sbr.rel (0) target = $region21
    $region20: #{tpu_custom_call.1} parent=1 // pred_region
      %s44 = ssub.s32 1024, 1024
      %45 = vsyncadd [#allocation7], %s44
      %s46 = sshll.u32 [#allocation8], 4
      %s47 = int_to_ptr.vmem [resolvable:$true] %s46
      %52 = dma.hbm_to_vmem [thread:$0]  %s4, 1024, %s47, [#allocation7], 64, 64, 4
    $region21: #{tpu_custom_call.1} parent=1 // pred_fallthru
      _
    // Predicated region
    $region22: #{tpu_custom_call.1} parent=1 // pred_check
      _
    $region23: #{tpu_custom_call.1} parent=1 // pred_check_branch
      %54 = sbr.rel (0) target = $region25
    $region24: #{tpu_custom_call.1} parent=1 // pred_region
      %55 = dma.done [#allocation4], 512
    $region25: #{tpu_custom_call.1} parent=1 // pred_fallthru
      _
    // Predicated region
    $region26: #{tpu_custom_call.1} parent=1 // pred_check
      _
    $region27: #{tpu_custom_call.1} parent=1 // pred_check_branch
      %57 = sbr.rel (0) target = $region29
    $region28: #{tpu_custom_call.1} parent=1 // pred_region
      %58 = dma.done [#allocation7], 1024
    $region29: #{tpu_custom_call.1} parent=1 // pred_fallthru
      _
    // Predicated region
    $region30: #{tpu_custom_call.1} parent=1 // pred_check
      _
    $region31: #{tpu_custom_call.1} parent=1 // pred_check_branch
      %60 = sbr.rel (0) target = $region33
    $region32: #{tpu_custom_call.1} parent=1 // pred_region
      %61 = dma.done [#allocation7], 1024
    $region33: #{tpu_custom_call.1} parent=1 // pred_fallthru
      _
    %p63 = scmp.eq.s32.totalorder 0, 0
    // Predicated region
    $region34: #{tpu_custom_call.1} parent=1 // pred_check
      %p64 = pneg %p63
    $region35: #{tpu_custom_call.1} parent=1 // pred_check_branch
      %66 = sbr.rel (%p64) target = $region37
    $region36: #{tpu_custom_call.1} parent=1 // pred_region
      %67 = vst [vmem:[#allocation2] sm:$0xff] 0.0
      %68 = vst [vmem:[#allocation2 + $0x8] sm:$0xff] 0.0
      %69 = vst [vmem:[#allocation2 + $0x10] sm:$0xff] 0.0
      %70 = vst [vmem:[#allocation2 + $0x18] sm:$0xff] 0.0
      %71 = vst [vmem:[#allocation2 + $0x20] sm:$0xff] 0.0
      %72 = vst [vmem:[#allocation2 + $0x28] sm:$0xff] 0.0
      %73 = vst [vmem:[#allocation2 + $0x30] sm:$0xff] 0.0
      %74 = vst [vmem:[#allocation2 + $0x38] sm:$0xff] 0.0
      %75 = vst [vmem:[#allocation2 + $0x40] sm:$0xff] 0.0
      %76 = vst [vmem:[#allocation2 + $0x48] sm:$0xff] 0.0
      %77 = vst [vmem:[#allocation2 + $0x50] sm:$0xff] 0.0
      %78 = vst [vmem:[#allocation2 + $0x58] sm:$0xff] 0.0
      %79 = vst [vmem:[#allocation2 + $0x60] sm:$0xff] 0.0
      %80 = vst [vmem:[#allocation2 + $0x68] sm:$0xff] 0.0
      %81 = vst [vmem:[#allocation2 + $0x70] sm:$0xff] 0.0
      %82 = vst [vmem:[#allocation2 + $0x78] sm:$0xff] 0.0
    $region37: #{tpu_custom_call.1} parent=1 // pred_fallthru
      _
    %v83 = vld [vmem:[#allocation3] sm:$0xff]
    %v84 = vld [vmem:[#allocation3 + $0x8] sm:$0xff]
    %v85 = vld [vmem:[#allocation3 + $0x10] sm:$0xff]
    %v86 = vld [vmem:[#allocation3 + $0x18] sm:$0xff]
    %v87 = vunpack.c.l.s8.bf16 %v83
    %v88 = vunpack.c.h.s8.bf16 %v83
    %v89 = vunpack.c.l.s8.bf16 %v84
    %v90 = vunpack.c.h.s8.bf16 %v84
    %v91 = vunpack.c.l.s8.bf16 %v85
    %v92 = vunpack.c.h.s8.bf16 %v85
    %v93 = vunpack.c.l.s8.bf16 %v86
    %v94 = vunpack.c.h.s8.bf16 %v86
    %v95 = vld [vmem:[#allocation2] sm:$0xff]
    %v96 = vld [vmem:[#allocation2 + $0x8] sm:$0xff]
    %v97 = vld [vmem:[#allocation2 + $0x10] sm:$0xff]
    %v98 = vld [vmem:[#allocation2 + $0x18] sm:$0xff]
    %v99 = vld [vmem:[#allocation2 + $0x20] sm:$0xff]
    %v100 = vld [vmem:[#allocation2 + $0x28] sm:$0xff]
    %v101 = vld [vmem:[#allocation2 + $0x30] sm:$0xff]
    %v102 = vld [vmem:[#allocation2 + $0x38] sm:$0xff]
    %v103 = vld [vmem:[#allocation2 + $0x40] sm:$0xff]
    %v104 = vld [vmem:[#allocation2 + $0x48] sm:$0xff]
    %v105 = vld [vmem:[#allocation2 + $0x50] sm:$0xff]
    %v106 = vld [vmem:[#allocation2 + $0x58] sm:$0xff]
    %v107 = vld [vmem:[#allocation2 + $0x60] sm:$0xff]
    %v108 = vld [vmem:[#allocation2 + $0x68] sm:$0xff]
    %v109 = vld [vmem:[#allocation2 + $0x70] sm:$0xff]
    %v110 = vld [vmem:[#allocation2 + $0x78] sm:$0xff]
    %v111 = vld [vmem:[#allocation6] sm:$0xf]
    %v112 = vld [vmem:[#allocation6 + $0x4] sm:$0xf]
    %v113 = vld [vmem:[#allocation6 + $0x8] sm:$0xf]
    %v114 = vld [vmem:[#allocation6 + $0xc] sm:$0xf]
    %v115 = vld [vmem:[#allocation6 + $0x10] sm:$0xf]
    %v116 = vld [vmem:[#allocation6 + $0x14] sm:$0xf]
    %v117 = vld [vmem:[#allocation6 + $0x18] sm:$0xf]
    %v118 = vld [vmem:[#allocation6 + $0x1c] sm:$0xf]
    %v119 = vld [vmem:[#allocation6 + $0x20] sm:$0xf]
    %v120 = vld [vmem:[#allocation6 + $0x24] sm:$0xf]
    %v121 = vld [vmem:[#allocation6 + $0x28] sm:$0xf]
    %v122 = vld [vmem:[#allocation6 + $0x2c] sm:$0xf]
    %v123 = vld [vmem:[#allocation6 + $0x30] sm:$0xf]
    %v124 = vld [vmem:[#allocation6 + $0x34] sm:$0xf]
    %v125 = vld [vmem:[#allocation6 + $0x38] sm:$0xf]
    %v126 = vld [vmem:[#allocation6 + $0x3c] sm:$0xf]
    %v143 = vunpack.c.l.b16 %v111
    %v144 = vunpack.c.l.b16 %v112
    %v145 = vunpack.c.l.b16 %v113
    %v146 = vunpack.c.l.b16 %v114
    %v147 = vunpack.c.l.b16 %v115
    %v148 = vunpack.c.l.b16 %v116
    %v149 = vunpack.c.l.b16 %v117
    %v150 = vunpack.c.l.b16 %v118
    %v151 = vunpack.c.l.b16 %v119
    %v152 = vunpack.c.l.b16 %v120
    %v153 = vunpack.c.l.b16 %v121
    %v154 = vunpack.c.l.b16 %v122
    %v155 = vunpack.c.l.b16 %v123
    %v156 = vunpack.c.l.b16 %v124
    %v157 = vunpack.c.l.b16 %v125
    %v158 = vunpack.c.l.b16 %v126
    %v159 = vpack.c.b16 %v144, %v143
    %v160 = vpack.c.b16 %v146, %v145
    %v161 = vpack.c.b16 %v148, %v147
    %v162 = vpack.c.b16 %v150, %v149
    %v163 = vpack.c.b16 %v152, %v151
    %v164 = vpack.c.b16 %v154, %v153
    %v165 = vpack.c.b16 %v156, %v155
    %v166 = vpack.c.b16 %v158, %v157
    %175 = vmatprep.subr.bf16.mxu0 0
    %176 = vmatpush1.bf16.msra.mxu0 %v159
    %177 = vmatprep.subr.bf16.mxu0 0
    %178 = vmatpush1.bf16.msra.mxu0 %v160
    %179 = vmatprep.subr.bf16.mxu0 0
    %180 = vmatpush1.bf16.msra.mxu0 %v161
    %181 = vmatprep.subr.bf16.mxu0 0
    %182 = vmatpush1.bf16.msra.mxu0 %v162
    %183 = vmatprep.subr.bf16.mxu0 0
    %184 = vmatpush1.bf16.msra.mxu0 %v163
    %185 = vmatprep.subr.bf16.mxu0 0
    %186 = vmatpush1.bf16.msra.mxu0 %v164
    %187 = vmatprep.subr.bf16.mxu0 0
    %188 = vmatpush1.bf16.msra.mxu0 %v165
    %189 = vmatprep.subr.bf16.mxu0 0
    %190 = vmatpush1.bf16.msra.mxu0 %v166
    %191 = vmatprep.subr.bf16.mxu0 0
    %192 = vmatpush1.bf16.msra.mxu0 0
    %193 = vmatprep.subr.bf16.mxu0 0
    %194 = vmatpush1.bf16.msra.mxu0 0
    %195 = vmatprep.subr.bf16.mxu0 0
    %196 = vmatpush1.bf16.msra.mxu0 0
    %197 = vmatprep.subr.bf16.mxu0 0
    %198 = vmatpush1.bf16.msra.mxu0 0
    %199 = vmatprep.subr.bf16.mxu0 0
    %200 = vmatpush1.bf16.msra.mxu0 0
    %201 = vmatprep.subr.bf16.mxu0 0
    %202 = vmatpush1.bf16.msra.mxu0 0
    %203 = vmatprep.subr.bf16.mxu0 0
    %204 = vmatpush1.bf16.msra.mxu0 0
    %205 = vmatprep.subr.bf16.mxu0 0
    %206 = vmatpush1.bf16.msra.mxu0 0
    %207 = vmatprep.mubr.bf16.mxu0 0
    %208 = vmatmul.mubr.bf16.gmra.mrb[0].mxu0 %v87
    %v209 = vpop.f32.mrb[0].mxu0
    %v210 = vadd.f32 0.0, %v209
    %v211 = vpop.f32.mrb[0].mxu0
    %v212 = vpop.f32.mrb[0].mxu0
    %v213 = vadd.f32 0.0, %v212
    %v214 = vpop.f32.mrb[0].mxu0
    %215 = vmatprep.mubr.bf16.mxu0 0
    %216 = vmatmul.mubr.bf16.gmra.mrb[0].mxu0 %v88
    %v217 = vpop.f32.mrb[0].mxu0
    %v218 = vadd.f32 0.0, %v217
    %v219 = vpop.f32.mrb[0].mxu0
    %v220 = vpop.f32.mrb[0].mxu0
    %v221 = vadd.f32 0.0, %v220
    %v222 = vpop.f32.mrb[0].mxu0
    %223 = vmatprep.mubr.bf16.mxu0 0
    %224 = vmatmul.mubr.bf16.gmra.mrb[0].mxu0 %v89
    %v225 = vpop.f32.mrb[0].mxu0
    %v226 = vadd.f32 0.0, %v225
    %v227 = vpop.f32.mrb[0].mxu0
    %v228 = vpop.f32.mrb[0].mxu0
    %v229 = vadd.f32 0.0, %v228
    %v230 = vpop.f32.mrb[0].mxu0
    %231 = vmatprep.mubr.bf16.mxu0 0
    %232 = vmatmul.mubr.bf16.gmra.mrb[0].mxu0 %v90
    %v233 = vpop.f32.mrb[0].mxu0
    %v234 = vadd.f32 0.0, %v233
    %v235 = vpop.f32.mrb[0].mxu0
    %v236 = vpop.f32.mrb[0].mxu0
    %v237 = vadd.f32 0.0, %v236
    %v238 = vpop.f32.mrb[0].mxu0
    %239 = vmatprep.mubr.bf16.mxu0 0
    %240 = vmatmul.mubr.bf16.gmra.mrb[0].mxu0 %v91
    %v241 = vpop.f32.mrb[0].mxu0
    %v242 = vadd.f32 0.0, %v241
    %v243 = vpop.f32.mrb[0].mxu0
    %v244 = vpop.f32.mrb[0].mxu0
    %v245 = vadd.f32 0.0, %v244
    %v246 = vpop.f32.mrb[0].mxu0
    %247 = vmatprep.mubr.bf16.mxu0 0
    %248 = vmatmul.mubr.bf16.gmra.mrb[0].mxu0 %v92
    %v249 = vpop.f32.mrb[0].mxu0
    %v250 = vadd.f32 0.0, %v249
    %v251 = vpop.f32.mrb[0].mxu0
    %v252 = vpop.f32.mrb[0].mxu0
    %v253 = vadd.f32 0.0, %v252
    %v254 = vpop.f32.mrb[0].mxu0
    %255 = vmatprep.mubr.bf16.mxu0 0
    %256 = vmatmul.mubr.bf16.gmra.mrb[0].mxu0 %v93
    %v257 = vpop.f32.mrb[0].mxu0
    %v258 = vadd.f32 0.0, %v257
    %v259 = vpop.f32.mrb[0].mxu0
    %v260 = vpop.f32.mrb[0].mxu0
    %v261 = vadd.f32 0.0, %v260
    %v262 = vpop.f32.mrb[0].mxu0
    %263 = vmatprep.mubr.bf16.mxu0 0
    %264 = vmatmul.mubr.bf16.gmra.mrb[0].mxu0 %v94
    %v265 = vpop.f32.mrb[0].mxu0
    %v266 = vadd.f32 0.0, %v265
    %v267 = vpop.f32.mrb[0].mxu0
    %v268 = vpop.f32.mrb[0].mxu0
    %v269 = vadd.f32 0.0, %v268
    %v270 = vpop.f32.mrb[0].mxu0
    %271 = vdwg.mxu0
    %v272 = vadd.f32 %v95, %v210
    %v273 = vadd.f32 %v96, %v213
    %v274 = vadd.f32 %v97, %v218
    %v275 = vadd.f32 %v98, %v221
    %v276 = vadd.f32 %v99, %v226
    %v277 = vadd.f32 %v100, %v229
    %v278 = vadd.f32 %v101, %v234
    %v279 = vadd.f32 %v102, %v237
    %v280 = vadd.f32 %v103, %v242
    %v281 = vadd.f32 %v104, %v245
    %v282 = vadd.f32 %v105, %v250
    %v283 = vadd.f32 %v106, %v253
    %v284 = vadd.f32 %v107, %v258
    %v285 = vadd.f32 %v108, %v261
    %v286 = vadd.f32 %v109, %v266
    %v287 = vadd.f32 %v110, %v269
    %288 = vst [vmem:[#allocation2] sm:$0xff] %v272
    %289 = vst [vmem:[#allocation2 + $0x8] sm:$0xff] %v273
    %290 = vst [vmem:[#allocation2 + $0x10] sm:$0xff] %v274
    %291 = vst [vmem:[#allocation2 + $0x18] sm:$0xff] %v275
    %292 = vst [vmem:[#allocation2 + $0x20] sm:$0xff] %v276
    %293 = vst [vmem:[#allocation2 + $0x28] sm:$0xff] %v277
    %294 = vst [vmem:[#allocation2 + $0x30] sm:$0xff] %v278
    %295 = vst [vmem:[#allocation2 + $0x38] sm:$0xff] %v279
    %296 = vst [vmem:[#allocation2 + $0x40] sm:$0xff] %v280
    %297 = vst [vmem:[#allocation2 + $0x48] sm:$0xff] %v281
    %298 = vst [vmem:[#allocation2 + $0x50] sm:$0xff] %v282
    %299 = vst [vmem:[#allocation2 + $0x58] sm:$0xff] %v283
    %300 = vst [vmem:[#allocation2 + $0x60] sm:$0xff] %v284
    %301 = vst [vmem:[#allocation2 + $0x68] sm:$0xff] %v285
    %302 = vst [vmem:[#allocation2 + $0x70] sm:$0xff] %v286
    %303 = vst [vmem:[#allocation2 + $0x78] sm:$0xff] %v287
    // Predicated region
    $region38: #{tpu_custom_call.1} parent=1 // pred_check
      %p304 = pneg %p63
    $region39: #{tpu_custom_call.1} parent=1 // pred_check_branch
      %306 = sbr.rel (%p304) target = $region41
    $region40: #{tpu_custom_call.1} parent=1 // pred_region
      %v307 = vld [vmem:[#allocation2] sm:$0xff]
      %v308 = vld [vmem:[#allocation2 + $0x8] sm:$0xff]
      %v309 = vld [vmem:[#allocation2 + $0x10] sm:$0xff]
      %v310 = vld [vmem:[#allocation2 + $0x18] sm:$0xff]
      %v311 = vld [vmem:[#allocation2 + $0x20] sm:$0xff]
      %v312 = vld [vmem:[#allocation2 + $0x28] sm:$0xff]
      %v313 = vld [vmem:[#allocation2 + $0x30] sm:$0xff]
      %v314 = vld [vmem:[#allocation2 + $0x38] sm:$0xff]
      %v315 = vld [vmem:[#allocation2 + $0x40] sm:$0xff]
      %v316 = vld [vmem:[#allocation2 + $0x48] sm:$0xff]
      %v317 = vld [vmem:[#allocation2 + $0x50] sm:$0xff]
      %v318 = vld [vmem:[#allocation2 + $0x58] sm:$0xff]
      %v319 = vld [vmem:[#allocation2 + $0x60] sm:$0xff]
      %v320 = vld [vmem:[#allocation2 + $0x68] sm:$0xff]
      %v321 = vld [vmem:[#allocation2 + $0x70] sm:$0xff]
      %v322 = vld [vmem:[#allocation2 + $0x78] sm:$0xff]
      %v323 = vld [vmem:[%s2] sm:$0xff]
      %v324 = vld [vmem:[%s2 + $0x8] sm:$0xff]
      %v325 = vld [vmem:[%s2 + $0x10] sm:$0xff]
      %v326 = vld [vmem:[%s2 + $0x18] sm:$0xff]
      %v327 = vld [vmem:[%s2 + $0x20] sm:$0xff]
      %v328 = vld [vmem:[%s2 + $0x28] sm:$0xff]
      %v329 = vld [vmem:[%s2 + $0x30] sm:$0xff]
      %v330 = vld [vmem:[%s2 + $0x38] sm:$0xff]
      %v331 = vld [vmem:[%s2 + $0x40] sm:$0xff]
      %v332 = vld [vmem:[%s2 + $0x48] sm:$0xff]
      %v333 = vld [vmem:[%s2 + $0x50] sm:$0xff]
      %v334 = vld [vmem:[%s2 + $0x58] sm:$0xff]
      %v335 = vld [vmem:[%s2 + $0x60] sm:$0xff]
      %v336 = vld [vmem:[%s2 + $0x68] sm:$0xff]
      %v337 = vld [vmem:[%s2 + $0x70] sm:$0xff]
      %v338 = vld [vmem:[%s2 + $0x78] sm:$0xff]
      %340 = vset.pattern.permute.xlu0 0
      %341 = vperm.xlu0 %340, %v323
      %v342 = vpop.permute.xlu0 %341
      %345 = vset.pattern.permute.xlu0 0
      %346 = vperm.xlu0 %345, %v324
      %v347 = vpop.permute.xlu0 %346
      %350 = vset.pattern.permute.xlu0 0
      %351 = vperm.xlu0 %350, %v325
      %v352 = vpop.permute.xlu0 %351
      %355 = vset.pattern.permute.xlu0 0
      %356 = vperm.xlu0 %355, %v326
      %v357 = vpop.permute.xlu0 %356
      %360 = vset.pattern.permute.xlu0 0
      %361 = vperm.xlu0 %360, %v327
      %v362 = vpop.permute.xlu0 %361
      %365 = vset.pattern.permute.xlu0 0
      %366 = vperm.xlu0 %365, %v328
      %v367 = vpop.permute.xlu0 %366
      %370 = vset.pattern.permute.xlu0 0
      %371 = vperm.xlu0 %370, %v329
      %v372 = vpop.permute.xlu0 %371
      %375 = vset.pattern.permute.xlu0 0
      %376 = vperm.xlu0 %375, %v330
      %v377 = vpop.permute.xlu0 %376
      %380 = vset.pattern.permute.xlu0 0
      %381 = vperm.xlu0 %380, %v331
      %v382 = vpop.permute.xlu0 %381
      %385 = vset.pattern.permute.xlu0 0
      %386 = vperm.xlu0 %385, %v332
      %v387 = vpop.permute.xlu0 %386
      %390 = vset.pattern.permute.xlu0 0
      %391 = vperm.xlu0 %390, %v333
      %v392 = vpop.permute.xlu0 %391
      %395 = vset.pattern.permute.xlu0 0
      %396 = vperm.xlu0 %395, %v334
      %v397 = vpop.permute.xlu0 %396
      %400 = vset.pattern.permute.xlu0 0
      %401 = vperm.xlu0 %400, %v335
      %v402 = vpop.permute.xlu0 %401
      %405 = vset.pattern.permute.xlu0 0
      %406 = vperm.xlu0 %405, %v336
      %v407 = vpop.permute.xlu0 %406
      %410 = vset.pattern.permute.xlu0 0
      %411 = vperm.xlu0 %410, %v337
      %v412 = vpop.permute.xlu0 %411
      %415 = vset.pattern.permute.xlu0 0
      %416 = vperm.xlu0 %415, %v338
      %v417 = vpop.permute.xlu0 %416
      %v419 = vmul.f32 %v307, %v342
      %v420 = vmul.f32 %v308, %v347
      %v421 = vmul.f32 %v309, %v352
      %v422 = vmul.f32 %v310, %v357
      %v423 = vmul.f32 %v311, %v362
      %v424 = vmul.f32 %v312, %v367
      %v425 = vmul.f32 %v313, %v372
      %v426 = vmul.f32 %v314, %v377
      %v427 = vmul.f32 %v315, %v382
      %v428 = vmul.f32 %v316, %v387
      %v429 = vmul.f32 %v317, %v392
      %v430 = vmul.f32 %v318, %v397
      %v431 = vmul.f32 %v319, %v402
      %v432 = vmul.f32 %v320, %v407
      %v433 = vmul.f32 %v321, %v412
      %v434 = vmul.f32 %v322, %v417
      %v435 = vpack.c.bf16 %v420, %v419
      %v436 = vpack.c.bf16 %v422, %v421
      %v437 = vpack.c.bf16 %v424, %v423
      %v438 = vpack.c.bf16 %v426, %v425
      %v439 = vpack.c.bf16 %v428, %v427
      %v440 = vpack.c.bf16 %v430, %v429
      %v441 = vpack.c.bf16 %v432, %v431
      %v442 = vpack.c.bf16 %v434, %v433
      %v443 = vld [vmem:[#allocation8] sm:$0xf]
      %v444 = vld [vmem:[#allocation8 + $0x4] sm:$0xf]
      %v445 = vld [vmem:[#allocation8 + $0x8] sm:$0xf]
      %v446 = vld [vmem:[#allocation8 + $0xc] sm:$0xf]
      %v447 = vld [vmem:[#allocation8 + $0x10] sm:$0xf]
      %v448 = vld [vmem:[#allocation8 + $0x14] sm:$0xf]
      %v449 = vld [vmem:[#allocation8 + $0x18] sm:$0xf]
      %v450 = vld [vmem:[#allocation8 + $0x1c] sm:$0xf]
      %v451 = vld [vmem:[#allocation8 + $0x20] sm:$0xf]
      %v452 = vld [vmem:[#allocation8 + $0x24] sm:$0xf]
      %v453 = vld [vmem:[#allocation8 + $0x28] sm:$0xf]
      %v454 = vld [vmem:[#allocation8 + $0x2c] sm:$0xf]
      %v455 = vld [vmem:[#allocation8 + $0x30] sm:$0xf]
      %v456 = vld [vmem:[#allocation8 + $0x34] sm:$0xf]
      %v457 = vld [vmem:[#allocation8 + $0x38] sm:$0xf]
      %v458 = vld [vmem:[#allocation8 + $0x3c] sm:$0xf]
      %v459 = vld [vmem:[%s3] sm:$0xff]
      %v460 = vld [vmem:[%s3 + $0x8] sm:$0xff]
      %v461 = vld [vmem:[%s3 + $0x10] sm:$0xff]
      %v462 = vld [vmem:[%s3 + $0x18] sm:$0xff]
      %v463 = vld [vmem:[%s3 + $0x20] sm:$0xff]
      %v464 = vld [vmem:[%s3 + $0x28] sm:$0xff]
      %v465 = vld [vmem:[%s3 + $0x30] sm:$0xff]
      %v466 = vld [vmem:[%s3 + $0x38] sm:$0xff]
      %v467 = vld [vmem:[%s3 + $0x40] sm:$0xff]
      %v468 = vld [vmem:[%s3 + $0x48] sm:$0xff]
      %v469 = vld [vmem:[%s3 + $0x50] sm:$0xff]
      %v470 = vld [vmem:[%s3 + $0x58] sm:$0xff]
      %v471 = vld [vmem:[%s3 + $0x60] sm:$0xff]
      %v472 = vld [vmem:[%s3 + $0x68] sm:$0xff]
      %v473 = vld [vmem:[%s3 + $0x70] sm:$0xff]
      %v474 = vld [vmem:[%s3 + $0x78] sm:$0xff]
      %v491 = vunpack.c.l.b16 %v443
      %v492 = vunpack.c.l.b16 %v444
      %v493 = vunpack.c.l.b16 %v445
      %v494 = vunpack.c.l.b16 %v446
      %v495 = vunpack.c.l.b16 %v447
      %v496 = vunpack.c.l.b16 %v448
      %v497 = vunpack.c.l.b16 %v449
      %v498 = vunpack.c.l.b16 %v450
      %v499 = vunpack.c.l.b16 %v451
      %v500 = vunpack.c.l.b16 %v452
      %v501 = vunpack.c.l.b16 %v453
      %v502 = vunpack.c.l.b16 %v454
      %v503 = vunpack.c.l.b16 %v455
      %v504 = vunpack.c.l.b16 %v456
      %v505 = vunpack.c.l.b16 %v457
      %v506 = vunpack.c.l.b16 %v458
      %v507 = vpack.c.b16 %v492, %v491
      %v508 = vpack.c.b16 %v494, %v493
      %v509 = vpack.c.b16 %v496, %v495
      %v510 = vpack.c.b16 %v498, %v497
      %v511 = vpack.c.b16 %v500, %v499
      %v512 = vpack.c.b16 %v502, %v501
      %v513 = vpack.c.b16 %v504, %v503
      %v514 = vpack.c.b16 %v506, %v505
      %523 = vmatprep.subr.bf16.mxu0 0
      %524 = vmatpush1.bf16.msra.mxu0 %v507
      %525 = vmatprep.subr.bf16.mxu0 0
      %526 = vmatpush1.bf16.msra.mxu0 %v508
      %527 = vmatprep.subr.bf16.mxu0 0
      %528 = vmatpush1.bf16.msra.mxu0 %v509
      %529 = vmatprep.subr.bf16.mxu0 0
      %530 = vmatpush1.bf16.msra.mxu0 %v510
      %531 = vmatprep.subr.bf16.mxu0 0
      %532 = vmatpush1.bf16.msra.mxu0 %v511
      %533 = vmatprep.subr.bf16.mxu0 0
      %534 = vmatpush1.bf16.msra.mxu0 %v512
      %535 = vmatprep.subr.bf16.mxu0 0
      %536 = vmatpush1.bf16.msra.mxu0 %v513
      %537 = vmatprep.subr.bf16.mxu0 0
      %538 = vmatpush1.bf16.msra.mxu0 %v514
      %539 = vmatprep.subr.bf16.mxu0 0
      %540 = vmatpush1.bf16.msra.mxu0 0
      %541 = vmatprep.subr.bf16.mxu0 0
      %542 = vmatpush1.bf16.msra.mxu0 0
      %543 = vmatprep.subr.bf16.mxu0 0
      %544 = vmatpush1.bf16.msra.mxu0 0
      %545 = vmatprep.subr.bf16.mxu0 0
      %546 = vmatpush1.bf16.msra.mxu0 0
      %547 = vmatprep.subr.bf16.mxu0 0
      %548 = vmatpush1.bf16.msra.mxu0 0
      %549 = vmatprep.subr.bf16.mxu0 0
      %550 = vmatpush1.bf16.msra.mxu0 0
      %551 = vmatprep.subr.bf16.mxu0 0
      %552 = vmatpush1.bf16.msra.mxu0 0
      %553 = vmatprep.subr.bf16.mxu0 0
      %554 = vmatpush1.bf16.msra.mxu0 0
      %555 = vmatprep.mubr.bf16.mxu0 0
      %556 = vmatmul.mubr.bf16.gmra.mrb[0].mxu0 %v435
      %v557 = vpop.f32.mrb[0].mxu0
      %v558 = vadd.f32 %v459, %v557
      %v559 = vpop.f32.mrb[0].mxu0
      %v560 = vpop.f32.mrb[0].mxu0
      %v561 = vadd.f32 %v460, %v560
      %v562 = vpop.f32.mrb[0].mxu0
      %563 = vmatprep.mubr.bf16.mxu0 0
      %564 = vmatmul.mubr.bf16.gmra.mrb[0].mxu0 %v436
      %v565 = vpop.f32.mrb[0].mxu0
      %v566 = vadd.f32 %v461, %v565
      %v567 = vpop.f32.mrb[0].mxu0
      %v568 = vpop.f32.mrb[0].mxu0
      %v569 = vadd.f32 %v462, %v568
      %v570 = vpop.f32.mrb[0].mxu0
      %571 = vmatprep.mubr.bf16.mxu0 0
      %572 = vmatmul.mubr.bf16.gmra.mrb[0].mxu0 %v437
      %v573 = vpop.f32.mrb[0].mxu0
      %v574 = vadd.f32 %v463, %v573
      %v575 = vpop.f32.mrb[0].mxu0
      %v576 = vpop.f32.mrb[0].mxu0
      %v577 = vadd.f32 %v464, %v576
      %v578 = vpop.f32.mrb[0].mxu0
      %579 = vmatprep.mubr.bf16.mxu0 0
      %580 = vmatmul.mubr.bf16.gmra.mrb[0].mxu0 %v438
      %v581 = vpop.f32.mrb[0].mxu0
      %v582 = vadd.f32 %v465, %v581
      %v583 = vpop.f32.mrb[0].mxu0
      %v584 = vpop.f32.mrb[0].mxu0
      %v585 = vadd.f32 %v466, %v584
      %v586 = vpop.f32.mrb[0].mxu0
      %587 = vmatprep.mubr.bf16.mxu0 0
      %588 = vmatmul.mubr.bf16.gmra.mrb[0].mxu0 %v439
      %v589 = vpop.f32.mrb[0].mxu0
      %v590 = vadd.f32 %v467, %v589
      %v591 = vpop.f32.mrb[0].mxu0
      %v592 = vpop.f32.mrb[0].mxu0
      %v593 = vadd.f32 %v468, %v592
      %v594 = vpop.f32.mrb[0].mxu0
      %595 = vmatprep.mubr.bf16.mxu0 0
      %596 = vmatmul.mubr.bf16.gmra.mrb[0].mxu0 %v440
      %v597 = vpop.f32.mrb[0].mxu0
      %v598 = vadd.f32 %v469, %v597
      %v599 = vpop.f32.mrb[0].mxu0
      %v600 = vpop.f32.mrb[0].mxu0
      %v601 = vadd.f32 %v470, %v600
      %v602 = vpop.f32.mrb[0].mxu0
      %603 = vmatprep.mubr.bf16.mxu0 0
      %604 = vmatmul.mubr.bf16.gmra.mrb[0].mxu0 %v441
      %v605 = vpop.f32.mrb[0].mxu0
      %v606 = vadd.f32 %v471, %v605
      %v607 = vpop.f32.mrb[0].mxu0
      %v608 = vpop.f32.mrb[0].mxu0
      %v609 = vadd.f32 %v472, %v608
      %v610 = vpop.f32.mrb[0].mxu0
      %611 = vmatprep.mubr.bf16.mxu0 0
      %612 = vmatmul.mubr.bf16.gmra.mrb[0].mxu0 %v442
      %v613 = vpop.f32.mrb[0].mxu0
      %v614 = vadd.f32 %v473, %v613
      %v615 = vpop.f32.mrb[0].mxu0
      %v616 = vpop.f32.mrb[0].mxu0
      %v617 = vadd.f32 %v474, %v616
      %v618 = vpop.f32.mrb[0].mxu0
      %619 = vdwg.mxu0
      %v620 = vmax.f32 %v558, 0.0
      %v621 = vmax.f32 %v561, 0.0
      %v622 = vmax.f32 %v566, 0.0
      %v623 = vmax.f32 %v569, 0.0
      %v624 = vmax.f32 %v574, 0.0
      %v625 = vmax.f32 %v577, 0.0
      %v626 = vmax.f32 %v582, 0.0
      %v627 = vmax.f32 %v585, 0.0
      %v628 = vmax.f32 %v590, 0.0
      %v629 = vmax.f32 %v593, 0.0
      %v630 = vmax.f32 %v598, 0.0
      %v631 = vmax.f32 %v601, 0.0
      %v632 = vmax.f32 %v606, 0.0
      %v633 = vmax.f32 %v609, 0.0
      %v634 = vmax.f32 %v614, 0.0
      %v635 = vmax.f32 %v617, 0.0
      %v636 = vpack.c.bf16 %v621, %v620
      %v637 = vpack.c.bf16 %v623, %v622
      %v638 = vpack.c.bf16 %v625, %v624
      %v639 = vpack.c.bf16 %v627, %v626
      %v640 = vpack.c.bf16 %v629, %v628
      %v641 = vpack.c.bf16 %v631, %v630
      %v642 = vpack.c.bf16 %v633, %v632
      %v643 = vpack.c.bf16 %v635, %v634
      %v652 = vunpack.c.l.b16 %v636
      %v653 = vunpack.c.h.b16 %v636
      %v654 = vunpack.c.l.b16 %v637
      %v655 = vunpack.c.h.b16 %v637
      %v656 = vunpack.c.l.b16 %v638
      %v657 = vunpack.c.h.b16 %v638
      %v658 = vunpack.c.l.b16 %v639
      %v659 = vunpack.c.h.b16 %v639
      %v660 = vunpack.c.l.b16 %v640
      %v661 = vunpack.c.h.b16 %v640
      %v662 = vunpack.c.l.b16 %v641
      %v663 = vunpack.c.h.b16 %v641
      %v664 = vunpack.c.l.b16 %v642
      %v665 = vunpack.c.h.b16 %v642
      %v666 = vunpack.c.l.b16 %v643
      %v667 = vunpack.c.h.b16 %v643
      %v668 = vpack.c.b16 %v652, %v652
      %v669 = vpack.c.b16 %v653, %v653
      %v670 = vpack.c.b16 %v654, %v654
      %v671 = vpack.c.b16 %v655, %v655
      %v672 = vpack.c.b16 %v656, %v656
      %v673 = vpack.c.b16 %v657, %v657
      %v674 = vpack.c.b16 %v658, %v658
      %v675 = vpack.c.b16 %v659, %v659
      %v676 = vpack.c.b16 %v660, %v660
      %v677 = vpack.c.b16 %v661, %v661
      %v678 = vpack.c.b16 %v662, %v662
      %v679 = vpack.c.b16 %v663, %v663
      %v680 = vpack.c.b16 %v664, %v664
      %v681 = vpack.c.b16 %v665, %v665
      %v682 = vpack.c.b16 %v666, %v666
      %v683 = vpack.c.b16 %v667, %v667
      %700 = vst [vmem:[#allocation9] sm:$0xf] %v668
      %701 = vst [vmem:[#allocation9 + $0x4] sm:$0xf] %v669
      %702 = vst [vmem:[#allocation9 + $0x8] sm:$0xf] %v670
      %703 = vst [vmem:[#allocation9 + $0xc] sm:$0xf] %v671
      %704 = vst [vmem:[#allocation9 + $0x10] sm:$0xf] %v672
      %705 = vst [vmem:[#allocation9 + $0x14] sm:$0xf] %v673
      %706 = vst [vmem:[#allocation9 + $0x18] sm:$0xf] %v674
      %707 = vst [vmem:[#allocation9 + $0x1c] sm:$0xf] %v675
      %708 = vst [vmem:[#allocation9 + $0x20] sm:$0xf] %v676
      %709 = vst [vmem:[#allocation9 + $0x24] sm:$0xf] %v677
      %710 = vst [vmem:[#allocation9 + $0x28] sm:$0xf] %v678
      %711 = vst [vmem:[#allocation9 + $0x2c] sm:$0xf] %v679
      %712 = vst [vmem:[#allocation9 + $0x30] sm:$0xf] %v680
      %713 = vst [vmem:[#allocation9 + $0x34] sm:$0xf] %v681
      %714 = vst [vmem:[#allocation9 + $0x38] sm:$0xf] %v682
      %715 = vst [vmem:[#allocation9 + $0x3c] sm:$0xf] %v683
    $region41: #{tpu_custom_call.1} parent=1 // pred_fallthru
      _
    // Predicated region
    $region42: #{tpu_custom_call.1} parent=1 // pred_check
      _
    $region43: #{tpu_custom_call.1} parent=1 // pred_check_branch
      %717 = sbr.rel (0) target = $region45
    $region44: #{tpu_custom_call.1} parent=1 // pred_region
      %s719 = ssub.s32 1024, 1024
      %720 = vsyncadd [#allocation5], %s719
      %s721 = sshll.u32 [#allocation9], 4
      %s722 = int_to_ptr.vmem [resolvable:$true] %s721
      %727 = dma.vmem_to_hbm [thread:$0]  %s722, 1024, %s5, [#allocation5], 64, 64, 4
    $region45: #{tpu_custom_call.1} parent=1 // pred_fallthru
      _
    // Predicated region
    $region46: #{tpu_custom_call.1} parent=1 // pred_check
      _
    $region47: #{tpu_custom_call.1} parent=1 // pred_check_branch
      %729 = sbr.rel (0) target = $region49
    $region48: #{tpu_custom_call.1} parent=1 // pred_region
      %730 = dma.done [#allocation5], 1024
    $region49: #{tpu_custom_call.1} parent=1 // pred_fallthru
      _
    %731 = vsyncpa [#allocation4], 1
    %732 = vsyncpa [#allocation7], 1
    %733 = vsyncpa [#allocation5], 1

</llo_original>
